<compile_context>
chip_gen: v7x
topology: tpu7x:2x2x1
jax: 0.10.0
libtpu: 0.0.40
codegen_flags: <defaults>
</compile_context>

<pallas_src>
import jax
import jax.numpy as jnp
from jax.experimental import pallas as pl
from jax.experimental.pallas import tpu as pltpu


def actor_critic_kernel(x_ref, w1_ref, b1_ref, w2_ref, b2_ref, out_ref):
    # x: [tb, S] bf16, w1: [S, 2H] bf16, b1: [1, 2H] f32,
    # w2: [2H, P] bf16 (block-diagonal), b2: [1, P] f32, out: [tb, P] f32.
    x = x_ref[...]

    # Fused first layer: hidden = tanh(x @ [Wp1 | Wv1] + [bp1 | bv1])
    h = jnp.dot(x, w1_ref[...], preferred_element_type=jnp.float32)
    h = jnp.tanh(h + b1_ref[...])                      # f32 elementwise (v5e-safe)

    # Fused second layer: out[:, :A] = pi1 @ Wp2 + bp2 ; out[:, A] = v1 @ Wv2 + bv2
    out = jnp.dot(h.astype(jnp.bfloat16), w2_ref[...],
                  preferred_element_type=jnp.float32)
    out = out + b2_ref[...]

    out_ref[...] = out.astype(out_ref.dtype)


def build_fused_params(params):
    """Fuse the 4 linear layers into one [S,2H] + one block-diagonal [2H,P]."""
    S, H = params["wp1"].shape
    A = params["wp2"].shape[1]
    P = max(128, pl.cdiv(A + 1, 128) * 128)            # lane-dense padded out width

    w1 = jnp.concatenate([params["wp1"], params["wv1"]], axis=1)    # [S, 2H]
    b1 = jnp.concatenate([params["bp1"], params["bv1"]], axis=1)    # [1, 2H]

    w2 = jnp.zeros((2 * H, P), jnp.float32)
    w2 = w2.at[:H, :A].set(params["wp2"])              # actor head -> cols [0, A)
    w2 = w2.at[H:, A].set(params["wv2"][:, 0])         # critic head -> col A
    b2 = jnp.zeros((1, P), jnp.float32)
    b2 = b2.at[0, :A].set(params["bp2"][0])
    b2 = b2.at[0, A].set(params["bv2"][0, 0])

    return {
        "w1": w1.astype(jnp.bfloat16),
        "b1": b1.astype(jnp.float32),
        "w2": w2.astype(jnp.bfloat16),
        "b2": b2.astype(jnp.float32),
        "A": A,
        "P": P,
    }


def _pick_batch_tile(B):
    for cand in (1024, 512, 256, 128, 64, 32, 16, 8):
        if B % cand == 0:
            return cand
    return B  # small / odd batch: single tile equal to full dim


def actor_critic_forward(state, fused):
    """state: [B, nStates] float32. fused: output of build_fused_params."""
    B, S = state.shape
    w1, b1, w2, b2 = fused["w1"], fused["b1"], fused["w2"], fused["b2"]
    H2 = w1.shape[1]
    P = w2.shape[1]
    A = fused["A"]

    tb = _pick_batch_tile(B)
    grid = (B // tb,)

    x_bf16 = state.astype(jnp.bfloat16)                # halve state DMA bytes

    out = pl.pallas_call(
        actor_critic_kernel,
        out_shape=jax.ShapeDtypeStruct((B, P), jnp.float32),
        grid_spec=pltpu.PrefetchScalarGridSpec(
            num_scalar_prefetch=0,
            grid=grid,
            in_specs=[
                pl.BlockSpec((tb, S), lambda i: (i, 0)),   # state tile per grid step
                pl.BlockSpec((S, H2), lambda i: (0, 0)),   # weights stay resident
                pl.BlockSpec((1, H2), lambda i: (0, 0)),
                pl.BlockSpec((H2, P), lambda i: (0, 0)),
                pl.BlockSpec((1, P), lambda i: (0, 0)),
            ],
            out_specs=pl.BlockSpec((tb, P), lambda i: (i, 0)),
        ),
        compiler_params=pltpu.CompilerParams(
            # Batch tiles are independent -> shard across TCs on v7x.
            dimension_semantics=("parallel",),
        ),
    )(x_bf16, w1, b1, w2, b2)

    logits = out[:, :A]
    values = out[:, A:A + 1]
    return logits, values


def init_params(key, n_states, n_actions, hidden=256):
    """Deterministic init matching nn.init.normal_(std=0.1), bias=0."""
    k1, k2, k3, k4 = jax.random.split(key, 4)
    std = 0.1
    return {
        # stored as [in, out] (transposed vs. torch's [out, in])
        "wp1": std * jax.random.normal(k1, (n_states, hidden), jnp.float32),
        "bp1": jnp.zeros((1, hidden), jnp.float32),
        "wp2": std * jax.random.normal(k2, (hidden, n_actions), jnp.float32),
        "bp2": jnp.zeros((1, n_actions), jnp.float32),
        "wv1": std * jax.random.normal(k3, (n_states, hidden), jnp.float32),
        "bv1": jnp.zeros((1, hidden), jnp.float32),
        "wv2": std * jax.random.normal(k4, (hidden, 1), jnp.float32),
        "bv2": jnp.zeros((1, 1), jnp.float32),
    }


def reference_forward_f32(state, params):
    """Pure-JAX f32 reference of the PyTorch forward()."""
    hp = lambda a, b: jnp.dot(a, b, precision=jax.lax.Precision.HIGHEST)
    pi1 = jnp.tanh(hp(state, params["wp1"]) + params["bp1"])
    v1 = jnp.tanh(hp(state, params["wv1"]) + params["bv1"])
    logits = hp(pi1, params["wp2"]) + params["bp2"]
    values = hp(v1, params["wv2"]) + params["bv2"]
    return logits, values


def reference_forward_bf16(state, params):
    """Reference replicating the kernel's bf16 operand quantization."""
    q = lambda a: a.astype(jnp.bfloat16).astype(jnp.float32)
    hp = lambda a, b: jnp.dot(a, b, precision=jax.lax.Precision.HIGHEST)
    x = q(state)
    pi1 = q(jnp.tanh(hp(x, q(params["wp1"])) + params["bp1"]))
    v1 = q(jnp.tanh(hp(x, q(params["wv1"])) + params["bv1"]))
    logits = hp(pi1, q(params["wp2"])) + params["bp2"]
    values = hp(v1, q(params["wv2"])) + params["bv2"]
    return logits, values


if __name__ == "__main__":
    n_states = 32     # nStates
    n_actions = 8     # nActions
    batch = 8

    key = jax.random.PRNGKey(0)
    pkey, skey = jax.random.split(key)

    params = init_params(pkey, n_states, n_actions)
    fused = build_fused_params(params)
    state = jax.random.normal(skey, (batch, n_states), jnp.float32)

    logits, values = actor_critic_forward(state, fused)
    logits = jax.block_until_ready(logits)
    values = jax.block_until_ready(values)

    assert logits.shape == (batch, n_actions)
    assert values.shape == (batch, 1)

    # Tight check vs. a reference that applies the same bf16 operand rounding.
    ref_l_q, ref_v_q = reference_forward_bf16(state, params)
    assert jnp.allclose(logits, ref_l_q, atol=2e-3, rtol=2e-3)
    assert jnp.allclose(values, ref_v_q, atol=2e-3, rtol=2e-3)

    # Sanity check vs. the full-f32 PyTorch-equivalent forward (bf16 tolerance).
    ref_l, ref_v = reference_forward_f32(state, params)
    assert jnp.allclose(logits, ref_l, atol=5e-2, rtol=5e-2)
    assert jnp.allclose(values, ref_v, atol=5e-2, rtol=5e-2)

    print("KERNEL_OK")
</pallas_src>

<mosaic_0001>
module attributes {stable_mosaic.version = 11 : i64} {
  func.func @actor_critic_kernel(%arg0: i32, %arg1: memref<8x32xbf16, #tpu.memory_space<vmem>>, %arg2: memref<32x512xbf16, #tpu.memory_space<vmem>>, %arg3: memref<1x512xf32, #tpu.memory_space<vmem>>, %arg4: memref<512x128xbf16, #tpu.memory_space<vmem>>, %arg5: memref<1x128xf32, #tpu.memory_space<vmem>>, %arg6: memref<8x128xf32, #tpu.memory_space<vmem>>) attributes {dimension_semantics = [#tpu.dimension_semantics<parallel>], iteration_bounds = array<i64: 1>, scalar_prefetch = 0 : i64, scratch_operands = 0 : i64, tpu.core_type = #tpu.core_type<tc>, window_params = [{transform_indices = @transform_0, window_bounds = array<i64: 8, 32>}, {pipeline_mode = #tpu.pipeline_mode<synchronous>, transform_indices = @transform_1, window_bounds = array<i64: 32, 512>}, {pipeline_mode = #tpu.pipeline_mode<synchronous>, transform_indices = @transform_2, window_bounds = array<i64: 1, 512>}, {pipeline_mode = #tpu.pipeline_mode<synchronous>, transform_indices = @transform_3, window_bounds = array<i64: 512, 128>}, {pipeline_mode = #tpu.pipeline_mode<synchronous>, transform_indices = @transform_4, window_bounds = array<i64: 1, 128>}, {transform_indices = @transform_5, window_bounds = array<i64: 8, 128>}]} {
    %c0 = arith.constant 0 : index
    %c0_0 = arith.constant 0 : index
    %0 = vector.load %arg1[%c0, %c0_0] : memref<8x32xbf16, #tpu.memory_space<vmem>>, vector<8x32xbf16>
    %c0_1 = arith.constant 0 : index
    %c0_2 = arith.constant 0 : index
    %1 = vector.load %arg2[%c0_1, %c0_2] : memref<32x512xbf16, #tpu.memory_space<vmem>>, vector<32x512xbf16>
    %cst = arith.constant dense<0.000000e+00> : vector<8x512xf32>
    %2 = tpu.matmul %0, %1, %cst {dimension_numbers = #tpu.dot_dimension_numbers<[1], [0], [0], [1], [0, 0, 1, 1], [], []>} : vector<8x32xbf16>, vector<32x512xbf16>, vector<8x512xf32> -> vector<8x512xf32>
    %c0_3 = arith.constant 0 : index
    %c0_4 = arith.constant 0 : index
    %3 = vector.load %arg3[%c0_3, %c0_4] : memref<1x512xf32, #tpu.memory_space<vmem>>, vector<1x512xf32>
    %4 = vector.broadcast %3 : vector<1x512xf32> to vector<8x512xf32>
    %5 = arith.addf %2, %4 : vector<8x512xf32>
    %6 = math.tanh %5 : vector<8x512xf32>
    %7 = arith.truncf %6 : vector<8x512xf32> to vector<8x512xbf16>
    %c0_5 = arith.constant 0 : index
    %c0_6 = arith.constant 0 : index
    %8 = vector.load %arg4[%c0_5, %c0_6] : memref<512x128xbf16, #tpu.memory_space<vmem>>, vector<512x128xbf16>
    %cst_7 = arith.constant dense<0.000000e+00> : vector<8x128xf32>
    %9 = tpu.matmul %7, %8, %cst_7 {dimension_numbers = #tpu.dot_dimension_numbers<[1], [0], [0], [1], [0, 0, 1, 1], [], []>} : vector<8x512xbf16>, vector<512x128xbf16>, vector<8x128xf32> -> vector<8x128xf32>
    %c0_8 = arith.constant 0 : index
    %c0_9 = arith.constant 0 : index
    %10 = vector.load %arg5[%c0_8, %c0_9] : memref<1x128xf32, #tpu.memory_space<vmem>>, vector<1x128xf32>
    %11 = vector.broadcast %10 : vector<1x128xf32> to vector<8x128xf32>
    %12 = arith.addf %9, %11 : vector<8x128xf32>
    %c0_10 = arith.constant 0 : index
    %c0_11 = arith.constant 0 : index
    %13 = vector.load %arg6[%c0_10, %c0_11] : memref<8x128xf32, #tpu.memory_space<vmem>>, vector<8x128xf32>
    tpu.vector_store %arg6[%c0_10, %c0_11], %12 {strides = array<i32>} : memref<8x128xf32, #tpu.memory_space<vmem>>, vector<8x128xf32>,
    return
  }
  func.func @transform_0(%arg0: i32) -> (i32, i32) {
    %c0_i32 = arith.constant 0 : i32
    %c0_i32_0 = arith.constant 0 : i32
    return %arg0, %c0_i32 : i32, i32
  }
  func.func @transform_1(%arg0: i32) -> (i32, i32) {
    %c0_i32 = arith.constant 0 : i32
    %c0_i32_0 = arith.constant 0 : i32
    %c0_i32_1 = arith.constant 0 : i32
    return %c0_i32, %c0_i32_0 : i32, i32
  }
  func.func @transform_2(%arg0: i32) -> (i32, i32) {
    %c0_i32 = arith.constant 0 : i32
    %c0_i32_0 = arith.constant 0 : i32
    %c0_i32_1 = arith.constant 0 : i32
    return %c0_i32, %c0_i32_0 : i32, i32
  }
  func.func @transform_3(%arg0: i32) -> (i32, i32) {
    %c0_i32 = arith.constant 0 : i32
    %c0_i32_0 = arith.constant 0 : i32
    %c0_i32_1 = arith.constant 0 : i32
    return %c0_i32, %c0_i32_0 : i32, i32
  }
  func.func @transform_4(%arg0: i32) -> (i32, i32) {
    %c0_i32 = arith.constant 0 : i32
    %c0_i32_0 = arith.constant 0 : i32
    %c0_i32_1 = arith.constant 0 : i32
    return %c0_i32, %c0_i32_0 : i32, i32
  }
  func.func @transform_5(%arg0: i32) -> (i32, i32) {
    %c0_i32 = arith.constant 0 : i32
    %c0_i32_0 = arith.constant 0 : i32
    return %arg0, %c0_i32 : i32, i32
  }
}

</mosaic_0001>

<llo_original>
// kernel: tpu_custom_call.1
$region0: #{tpu_custom_call.1}
  #allocation0 [shape = 'u32[]', space=smem, size = 0x4, offset = 0x4, fixed_abs, tag = 'smem constant byte address 0x4 - core index']
  #allocation1 [shape = 'u32[144,128]{1,0:T(1,128)}', space=vmem, size = 0x12000, scoped, tag = 'internal scratch']
  %s0 = inlined_call_operand.hbm [shape: bf16[8,32], index: 0, kind: input, shape index: {}]
  %s1 = inlined_call_operand.hbm [shape: bf16[32,512], index: 1, kind: input, shape index: {}]
  %s2 = inlined_call_operand.vmem [shape: f32[1,512], index: 2, kind: input, shape index: {}]
  %s3 = inlined_call_operand.hbm [shape: bf16[512,128], index: 3, kind: input, shape index: {}]
  %s4 = inlined_call_operand.vmem [shape: f32[1,128], index: 4, kind: input, shape index: {}]
  %s5 = inlined_call_operand.hbm [shape: f32[8,128], index: 5, kind: output, shape index: {}]
  %s6 = sld [smem:[#allocation0]]
  $region42: #{tpu_custom_call.1} parent=0
    _
  %s8 = ssub.s32 1, %s6
  %s9 = scalar_select 0, %s8, %s6
  $region1: #{tpu_custom_call.1} parent=0
    #allocation2 [shape = 'u8[2048]{0}', space=vmem, size = 0x800, scoped, tag = 'input window, operand 0, single buffered']
    #allocation3 [shape = 's32[1]{0}', space=sflag, size = 0x4, scoped, tag = 'scoped memory for tpu_custom_call.1']
    #allocation4 [shape = 's32[1]{0}', space=sflag, size = 0x4, scoped, tag = 'scoped memory for tpu_custom_call.1']
    #allocation5 [shape = 'u8[32768]{0}', space=vmem, size = 0x8000, scoped, tag = 'input window, operand 1, single buffered']
    #allocation6 [shape = 's32[1]{0}', space=sflag, size = 0x4, scoped, tag = 'scoped memory for tpu_custom_call.1']
    #allocation7 [shape = 'u8[131072]{0}', space=vmem, size = 0x20000, scoped, tag = 'input window, operand 3, single buffered']
    #allocation8 [shape = 'u8[4096]{0}', space=vmem, size = 0x1000, scoped, tag = 'output window, operand 0, single buffered']
    %10 = vsyncpa [#allocation3], 0
    %11 = vsyncpa [#allocation6], 0
    %12 = vsyncpa [#allocation4], 0
    // Predicated region
    $region2: #{tpu_custom_call.1} parent=1 // pred_check
      _
    $region3: #{tpu_custom_call.1} parent=1 // pred_check_branch
      %14 = sbr.rel (0) target = $region5
    $region4: #{tpu_custom_call.1} parent=1 // pred_region
      %s16 = ssub.s32 64, 64
      %17 = vsyncadd [#allocation3], %s16
      %s19 = sshll.u32 [#allocation2], 4
      %s20 = int_to_ptr.vmem [resolvable:$true] %s19
      %22 = dma.hbm_to_vmem [thread:$0]  %s0, 64, %s20, [#allocation3]
    $region5: #{tpu_custom_call.1} parent=1 // pred_fallthru
      _
    // Predicated region
    $region6: #{tpu_custom_call.1} parent=1 // pred_check
      _
    $region7: #{tpu_custom_call.1} parent=1 // pred_check_branch
      %24 = sbr.rel (0) target = $region9
    $region8: #{tpu_custom_call.1} parent=1 // pred_region
      %s26 = ssub.s32 1024, 1024
      %27 = vsyncadd [#allocation6], %s26
      %s28 = sshll.u32 [#allocation5], 4
      %s29 = int_to_ptr.vmem [resolvable:$true] %s28
      %34 = dma.hbm_to_vmem [thread:$0]  %s1, 1024, %s29, [#allocation6], 256, 256, 16
    $region9: #{tpu_custom_call.1} parent=1 // pred_fallthru
      _
    // Predicated region
    $region10: #{tpu_custom_call.1} parent=1 // pred_check
      _
    $region11: #{tpu_custom_call.1} parent=1 // pred_check_branch
      %36 = sbr.rel (0) target = $region13
    $region12: #{tpu_custom_call.1} parent=1 // pred_region
      _
    $region13: #{tpu_custom_call.1} parent=1 // pred_fallthru
      _
    // Predicated region
    $region14: #{tpu_custom_call.1} parent=1 // pred_check
      _
    $region15: #{tpu_custom_call.1} parent=1 // pred_check_branch
      %38 = sbr.rel (0) target = $region17
    $region16: #{tpu_custom_call.1} parent=1 // pred_region
      %s40 = ssub.s32 4096, 4096
      %41 = vsyncadd [#allocation6], %s40
      %s42 = sshll.u32 [#allocation7], 4
      %s43 = int_to_ptr.vmem [resolvable:$true] %s42
      %48 = dma.hbm_to_vmem [thread:$0]  %s3, 4096, %s43, [#allocation6], 64, 64, 4
    $region17: #{tpu_custom_call.1} parent=1 // pred_fallthru
      _
    // Predicated region
    $region18: #{tpu_custom_call.1} parent=1 // pred_check
      _
    $region19: #{tpu_custom_call.1} parent=1 // pred_check_branch
      %50 = sbr.rel (0) target = $region21
    $region20: #{tpu_custom_call.1} parent=1 // pred_region
      _
    $region21: #{tpu_custom_call.1} parent=1 // pred_fallthru
      _
    // Predicated region
    $region22: #{tpu_custom_call.1} parent=1 // pred_check
      _
    $region23: #{tpu_custom_call.1} parent=1 // pred_check_branch
      %52 = sbr.rel (0) target = $region25
    $region24: #{tpu_custom_call.1} parent=1 // pred_region
      %53 = dma.done [#allocation3], 64
    $region25: #{tpu_custom_call.1} parent=1 // pred_fallthru
      _
    // Predicated region
    $region26: #{tpu_custom_call.1} parent=1 // pred_check
      _
    $region27: #{tpu_custom_call.1} parent=1 // pred_check_branch
      %55 = sbr.rel (0) target = $region29
    $region28: #{tpu_custom_call.1} parent=1 // pred_region
      %56 = dma.done [#allocation6], 1024
    $region29: #{tpu_custom_call.1} parent=1 // pred_fallthru
      _
    // Predicated region
    $region30: #{tpu_custom_call.1} parent=1 // pred_check
      _
    $region31: #{tpu_custom_call.1} parent=1 // pred_check_branch
      %58 = sbr.rel (0) target = $region33
    $region32: #{tpu_custom_call.1} parent=1 // pred_region
      %59 = dma.done [#allocation6], 4096
    $region33: #{tpu_custom_call.1} parent=1 // pred_fallthru
      _
    %v61 = vld [vmem:[#allocation2] sm:$0xf]
    %v62 = vld [vmem:[#allocation5] sm:$0xff]
    %v63 = vld [vmem:[#allocation5 + $0x8] sm:$0xff]
    %v64 = vld [vmem:[#allocation5 + $0x10] sm:$0xff]
    %v65 = vld [vmem:[#allocation5 + $0x18] sm:$0xff]
    %v66 = vld [vmem:[#allocation5 + $0x20] sm:$0xff]
    %v67 = vld [vmem:[#allocation5 + $0x28] sm:$0xff]
    %v68 = vld [vmem:[#allocation5 + $0x30] sm:$0xff]
    %v69 = vld [vmem:[#allocation5 + $0x38] sm:$0xff]
    %v70 = vld [vmem:[%s2] sm:$0xf]
    %v72 = vlaneseq
    %v73 = vshrl.u32 %v72, 7
    %v74 = vsub.s32 0, %v73
    %v75 = vrot.slane %v70, %v74
    %v76 = vlaneseq
    %v77 = vshrl.u32 %v76, 7
    %v78 = vsub.s32 1, %v77
    %v79 = vrot.slane %v70, %v78
    %v80 = vlaneseq
    %v81 = vshrl.u32 %v80, 7
    %v82 = vsub.s32 2, %v81
    %v83 = vrot.slane %v70, %v82
    %v84 = vlaneseq
    %v85 = vshrl.u32 %v84, 7
    %v86 = vsub.s32 3, %v85
    %v87 = vrot.slane %v70, %v86
    %v100 = vunpack.c.l.b16 %v62
    %v101 = vunpack.c.h.b16 %v62
    %v102 = vunpack.c.l.b16 %v63
    %v103 = vunpack.c.h.b16 %v63
    %v104 = vunpack.c.l.b16 %v64
    %v105 = vunpack.c.h.b16 %v64
    %v106 = vunpack.c.l.b16 %v65
    %v107 = vunpack.c.h.b16 %v65
    %v108 = vunpack.c.l.b16 %v66
    %v109 = vunpack.c.h.b16 %v66
    %v110 = vunpack.c.l.b16 %v67
    %v111 = vunpack.c.h.b16 %v67
    %v112 = vunpack.c.l.b16 %v68
    %v113 = vunpack.c.h.b16 %v68
    %v114 = vunpack.c.l.b16 %v69
    %v115 = vunpack.c.h.b16 %v69
    %v116 = vpack.c.b16 %v104, %v100
    %v117 = vpack.c.b16 %v105, %v101
    %v118 = vpack.c.b16 %v106, %v102
    %v119 = vpack.c.b16 %v107, %v103
    %v120 = vpack.c.b16 %v112, %v108
    %v121 = vpack.c.b16 %v113, %v109
    %v122 = vpack.c.b16 %v114, %v110
    %v123 = vpack.c.b16 %v115, %v111
    %vm132 = vcmask 261120
    %v134 = vsel %vm132, %v61, 0
    %136 = vmatprep.subr.bf16.mxu0 %v117
    %137 = vmatpush1.bf16.msra.mxu0 %v116
    %138 = vmatprep.subr.bf16.mxu0 %v121
    %139 = vmatpush1.bf16.msra.mxu0 %v120
    %140 = vmatprep.subr.bf16.mxu0 0
    %141 = vmatpush1.bf16.msra.mxu0 0
    %142 = vmatprep.subr.bf16.mxu0 0
    %143 = vmatpush1.bf16.msra.mxu0 0
    %144 = vmatprep.subr.bf16.mxu0 0
    %145 = vmatpush1.bf16.msra.mxu0 0
    %146 = vmatprep.subr.bf16.mxu0 0
    %147 = vmatpush1.bf16.msra.mxu0 0
    %148 = vmatprep.subr.bf16.mxu0 0
    %149 = vmatpush1.bf16.msra.mxu0 0
    %150 = vmatprep.subr.bf16.mxu0 0
    %151 = vmatpush1.bf16.msra.mxu0 0
    %152 = vmatprep.subr.bf16.mxu0 0
    %153 = vmatpush1.bf16.msra.mxu0 0
    %154 = vmatprep.subr.bf16.mxu0 0
    %155 = vmatpush1.bf16.msra.mxu0 0
    %156 = vmatprep.subr.bf16.mxu0 0
    %157 = vmatpush1.bf16.msra.mxu0 0
    %158 = vmatprep.subr.bf16.mxu0 0
    %159 = vmatpush1.bf16.msra.mxu0 0
    %160 = vmatprep.subr.bf16.mxu0 0
    %161 = vmatpush1.bf16.msra.mxu0 0
    %162 = vmatprep.subr.bf16.mxu0 0
    %163 = vmatpush1.bf16.msra.mxu0 0
    %164 = vmatprep.subr.bf16.mxu0 0
    %165 = vmatpush1.bf16.msra.mxu0 0
    %166 = vmatprep.subr.bf16.mxu0 0
    %167 = vmatpush1.bf16.msra.mxu0 0
    %168 = vmatprep.mubr.bf16.mxu0 0
    %169 = vmatmul.mubr.bf16.gmra.mrb[0].mxu0 %v134
    %v170 = vpop.f32.mrb[0].mxu0
    %v171 = vadd.f32 %v75, %v170
    %v172 = vpop.f32.mrb[0].mxu0
    %v173 = vadd.f32 %v79, %v172
    %v174 = vpop.f32.mrb[0].mxu0
    %v175 = vpop.f32.mrb[0].mxu0
    %176 = vdwg.mxu0
    %177 = vmatprep.subr.bf16.mxu0 %v119
    %178 = vmatpush1.bf16.msra.mxu0 %v118
    %179 = vmatprep.subr.bf16.mxu0 %v123
    %180 = vmatpush1.bf16.msra.mxu0 %v122
    %181 = vmatprep.subr.bf16.mxu0 0
    %182 = vmatpush1.bf16.msra.mxu0 0
    %183 = vmatprep.subr.bf16.mxu0 0
    %184 = vmatpush1.bf16.msra.mxu0 0
    %185 = vmatprep.subr.bf16.mxu0 0
    %186 = vmatpush1.bf16.msra.mxu0 0
    %187 = vmatprep.subr.bf16.mxu0 0
    %188 = vmatpush1.bf16.msra.mxu0 0
    %189 = vmatprep.subr.bf16.mxu0 0
    %190 = vmatpush1.bf16.msra.mxu0 0
    %191 = vmatprep.subr.bf16.mxu0 0
    %192 = vmatpush1.bf16.msra.mxu0 0
    %193 = vmatprep.subr.bf16.mxu0 0
    %194 = vmatpush1.bf16.msra.mxu0 0
    %195 = vmatprep.subr.bf16.mxu0 0
    %196 = vmatpush1.bf16.msra.mxu0 0
    %197 = vmatprep.subr.bf16.mxu0 0
    %198 = vmatpush1.bf16.msra.mxu0 0
    %199 = vmatprep.subr.bf16.mxu0 0
    %200 = vmatpush1.bf16.msra.mxu0 0
    %201 = vmatprep.subr.bf16.mxu0 0
    %202 = vmatpush1.bf16.msra.mxu0 0
    %203 = vmatprep.subr.bf16.mxu0 0
    %204 = vmatpush1.bf16.msra.mxu0 0
    %205 = vmatprep.subr.bf16.mxu0 0
    %206 = vmatpush1.bf16.msra.mxu0 0
    %207 = vmatprep.subr.bf16.mxu0 0
    %208 = vmatpush1.bf16.msra.mxu0 0
    %209 = vmatprep.mubr.bf16.mxu0 0
    %210 = vmatmul.mubr.bf16.gmra.mrb[0].mxu0 %v134
    %v211 = vpop.f32.mrb[0].mxu0
    %v212 = vadd.f32 %v83, %v211
    %v213 = vpop.f32.mrb[0].mxu0
    %v214 = vadd.f32 %v87, %v213
    %v215 = vpop.f32.mrb[0].mxu0
    %v216 = vpop.f32.mrb[0].mxu0
    %217 = vdwg.mxu0
    %v218 = vtanh.pop %v171
    %v219 = vtanh.pop %v173
    %v220 = vtanh.pop %v212
    %v221 = vtanh.pop %v214
    %v222 = vpack.c.bf16 %v218, %v218
    %v223 = vpack.c.bf16 %v219, %v219
    %v224 = vpack.c.bf16 %v220, %v220
    %v225 = vpack.c.bf16 %v221, %v221
    %v226 = vld [vmem:[#allocation7] sm:$0xf]
    %v227 = vld [vmem:[#allocation7 + $0x4] sm:$0xf]
    %v228 = vld [vmem:[#allocation7 + $0x8] sm:$0xf]
    %v229 = vld [vmem:[#allocation7 + $0xc] sm:$0xf]
    %v230 = vld [vmem:[#allocation7 + $0x10] sm:$0xf]
    %v231 = vld [vmem:[#allocation7 + $0x14] sm:$0xf]
    %v232 = vld [vmem:[#allocation7 + $0x18] sm:$0xf]
    %v233 = vld [vmem:[#allocation7 + $0x1c] sm:$0xf]
    %v234 = vld [vmem:[#allocation7 + $0x20] sm:$0xf]
    %v235 = vld [vmem:[#allocation7 + $0x24] sm:$0xf]
    %v236 = vld [vmem:[#allocation7 + $0x28] sm:$0xf]
    %v237 = vld [vmem:[#allocation7 + $0x2c] sm:$0xf]
    %v238 = vld [vmem:[#allocation7 + $0x30] sm:$0xf]
    %v239 = vld [vmem:[#allocation7 + $0x34] sm:$0xf]
    %v240 = vld [vmem:[#allocation7 + $0x38] sm:$0xf]
    %v241 = vld [vmem:[#allocation7 + $0x3c] sm:$0xf]
    %v242 = vld [vmem:[#allocation7 + $0x40] sm:$0xf]
    %v243 = vld [vmem:[#allocation7 + $0x44] sm:$0xf]
    %v244 = vld [vmem:[#allocation7 + $0x48] sm:$0xf]
    %v245 = vld [vmem:[#allocation7 + $0x4c] sm:$0xf]
    %v246 = vld [vmem:[#allocation7 + $0x50] sm:$0xf]
    %v247 = vld [vmem:[#allocation7 + $0x54] sm:$0xf]
    %v248 = vld [vmem:[#allocation7 + $0x58] sm:$0xf]
    %v249 = vld [vmem:[#allocation7 + $0x5c] sm:$0xf]
    %v250 = vld [vmem:[#allocation7 + $0x60] sm:$0xf]
    %v251 = vld [vmem:[#allocation7 + $0x64] sm:$0xf]
    %v252 = vld [vmem:[#allocation7 + $0x68] sm:$0xf]
    %v253 = vld [vmem:[#allocation7 + $0x6c] sm:$0xf]
    %v254 = vld [vmem:[#allocation7 + $0x70] sm:$0xf]
    %v255 = vld [vmem:[#allocation7 + $0x74] sm:$0xf]
    %v256 = vld [vmem:[#allocation7 + $0x78] sm:$0xf]
    %v257 = vld [vmem:[#allocation7 + $0x7c] sm:$0xf]
    %v258 = vld [vmem:[#allocation7 + $0x80] sm:$0xf]
    %v259 = vld [vmem:[#allocation7 + $0x84] sm:$0xf]
    %v260 = vld [vmem:[#allocation7 + $0x88] sm:$0xf]
    %v261 = vld [vmem:[#allocation7 + $0x8c] sm:$0xf]
    %v262 = vld [vmem:[#allocation7 + $0x90] sm:$0xf]
    %v263 = vld [vmem:[#allocation7 + $0x94] sm:$0xf]
    %v264 = vld [vmem:[#allocation7 + $0x98] sm:$0xf]
    %v265 = vld [vmem:[#allocation7 + $0x9c] sm:$0xf]
    %v266 = vld [vmem:[#allocation7 + $0xa0] sm:$0xf]
    %v267 = vld [vmem:[#allocation7 + $0xa4] sm:$0xf]
    %v268 = vld [vmem:[#allocation7 + $0xa8] sm:$0xf]
    %v269 = vld [vmem:[#allocation7 + $0xac] sm:$0xf]
    %v270 = vld [vmem:[#allocation7 + $0xb0] sm:$0xf]
    %v271 = vld [vmem:[#allocation7 + $0xb4] sm:$0xf]
    %v272 = vld [vmem:[#allocation7 + $0xb8] sm:$0xf]
    %v273 = vld [vmem:[#allocation7 + $0xbc] sm:$0xf]
    %v274 = vld [vmem:[#allocation7 + $0xc0] sm:$0xf]
    %v275 = vld [vmem:[#allocation7 + $0xc4] sm:$0xf]
    %v276 = vld [vmem:[#allocation7 + $0xc8] sm:$0xf]
    %v277 = vld [vmem:[#allocation7 + $0xcc] sm:$0xf]
    %v278 = vld [vmem:[#allocation7 + $0xd0] sm:$0xf]
    %v279 = vld [vmem:[#allocation7 + $0xd4] sm:$0xf]
    %v280 = vld [vmem:[#allocation7 + $0xd8] sm:$0xf]
    %v281 = vld [vmem:[#allocation7 + $0xdc] sm:$0xf]
    %v282 = vld [vmem:[#allocation7 + $0xe0] sm:$0xf]
    %v283 = vld [vmem:[#allocation7 + $0xe4] sm:$0xf]
    %v284 = vld [vmem:[#allocation7 + $0xe8] sm:$0xf]
    %v285 = vld [vmem:[#allocation7 + $0xec] sm:$0xf]
    %v286 = vld [vmem:[#allocation7 + $0xf0] sm:$0xf]
    %v287 = vld [vmem:[#allocation7 + $0xf4] sm:$0xf]
    %v288 = vld [vmem:[#allocation7 + $0xf8] sm:$0xf]
    %v289 = vld [vmem:[#allocation7 + $0xfc] sm:$0xf]
    %v290 = vld [vmem:[%s4] sm:$0x1]
    %v292 = vlaneseq
    %v293 = vshrl.u32 %v292, 7
    %v294 = vsub.s32 0, %v293
    %v295 = vrot.slane %v290, %v294
    %v361 = vunpack.c.l.b16 %v226
    %v362 = vunpack.c.l.b16 %v227
    %v363 = vunpack.c.l.b16 %v228
    %v364 = vunpack.c.l.b16 %v229
    %v365 = vunpack.c.l.b16 %v230
    %v366 = vunpack.c.l.b16 %v231
    %v367 = vunpack.c.l.b16 %v232
    %v368 = vunpack.c.l.b16 %v233
    %v369 = vunpack.c.l.b16 %v234
    %v370 = vunpack.c.l.b16 %v235
    %v371 = vunpack.c.l.b16 %v236
    %v372 = vunpack.c.l.b16 %v237
    %v373 = vunpack.c.l.b16 %v238
    %v374 = vunpack.c.l.b16 %v239
    %v375 = vunpack.c.l.b16 %v240
    %v376 = vunpack.c.l.b16 %v241
    %v377 = vunpack.c.l.b16 %v242
    %v378 = vunpack.c.l.b16 %v243
    %v379 = vunpack.c.l.b16 %v244
    %v380 = vunpack.c.l.b16 %v245
    %v381 = vunpack.c.l.b16 %v246
    %v382 = vunpack.c.l.b16 %v247
    %v383 = vunpack.c.l.b16 %v248
    %v384 = vunpack.c.l.b16 %v249
    %v385 = vunpack.c.l.b16 %v250
    %v386 = vunpack.c.l.b16 %v251
    %v387 = vunpack.c.l.b16 %v252
    %v388 = vunpack.c.l.b16 %v253
    %v389 = vunpack.c.l.b16 %v254
    %v390 = vunpack.c.l.b16 %v255
    %v391 = vunpack.c.l.b16 %v256
    %v392 = vunpack.c.l.b16 %v257
    %v393 = vunpack.c.l.b16 %v258
    %v394 = vunpack.c.l.b16 %v259
    %v395 = vunpack.c.l.b16 %v260
    %v396 = vunpack.c.l.b16 %v261
    %v397 = vunpack.c.l.b16 %v262
    %v398 = vunpack.c.l.b16 %v263
    %v399 = vunpack.c.l.b16 %v264
    %v400 = vunpack.c.l.b16 %v265
    %v401 = vunpack.c.l.b16 %v266
    %v402 = vunpack.c.l.b16 %v267
    %v403 = vunpack.c.l.b16 %v268
    %v404 = vunpack.c.l.b16 %v269
    %v405 = vunpack.c.l.b16 %v270
    %v406 = vunpack.c.l.b16 %v271
    %v407 = vunpack.c.l.b16 %v272
    %v408 = vunpack.c.l.b16 %v273
    %v409 = vunpack.c.l.b16 %v274
    %v410 = vunpack.c.l.b16 %v275
    %v411 = vunpack.c.l.b16 %v276
    %v412 = vunpack.c.l.b16 %v277
    %v413 = vunpack.c.l.b16 %v278
    %v414 = vunpack.c.l.b16 %v279
    %v415 = vunpack.c.l.b16 %v280
    %v416 = vunpack.c.l.b16 %v281
    %v417 = vunpack.c.l.b16 %v282
    %v418 = vunpack.c.l.b16 %v283
    %v419 = vunpack.c.l.b16 %v284
    %v420 = vunpack.c.l.b16 %v285
    %v421 = vunpack.c.l.b16 %v286
    %v422 = vunpack.c.l.b16 %v287
    %v423 = vunpack.c.l.b16 %v288
    %v424 = vunpack.c.l.b16 %v289
    %v425 = vpack.c.b16 %v362, %v361
    %v426 = vpack.c.b16 %v364, %v363
    %v427 = vpack.c.b16 %v366, %v365
    %v428 = vpack.c.b16 %v368, %v367
    %v429 = vpack.c.b16 %v370, %v369
    %v430 = vpack.c.b16 %v372, %v371
    %v431 = vpack.c.b16 %v374, %v373
    %v432 = vpack.c.b16 %v376, %v375
    %v433 = vpack.c.b16 %v378, %v377
    %v434 = vpack.c.b16 %v380, %v379
    %v435 = vpack.c.b16 %v382, %v381
    %v436 = vpack.c.b16 %v384, %v383
    %v437 = vpack.c.b16 %v386, %v385
    %v438 = vpack.c.b16 %v388, %v387
    %v439 = vpack.c.b16 %v390, %v389
    %v440 = vpack.c.b16 %v392, %v391
    %v441 = vpack.c.b16 %v394, %v393
    %v442 = vpack.c.b16 %v396, %v395
    %v443 = vpack.c.b16 %v398, %v397
    %v444 = vpack.c.b16 %v400, %v399
    %v445 = vpack.c.b16 %v402, %v401
    %v446 = vpack.c.b16 %v404, %v403
    %v447 = vpack.c.b16 %v406, %v405
    %v448 = vpack.c.b16 %v408, %v407
    %v449 = vpack.c.b16 %v410, %v409
    %v450 = vpack.c.b16 %v412, %v411
    %v451 = vpack.c.b16 %v414, %v413
    %v452 = vpack.c.b16 %v416, %v415
    %v453 = vpack.c.b16 %v418, %v417
    %v454 = vpack.c.b16 %v420, %v419
    %v455 = vpack.c.b16 %v422, %v421
    %v456 = vpack.c.b16 %v424, %v423
    %489 = vmatprep.subr.bf16.mxu0 0
    %490 = vmatpush1.bf16.msra.mxu0 %v425
    %491 = vmatprep.subr.bf16.mxu0 0
    %492 = vmatpush1.bf16.msra.mxu0 %v426
    %493 = vmatprep.subr.bf16.mxu0 0
    %494 = vmatpush1.bf16.msra.mxu0 %v427
    %495 = vmatprep.subr.bf16.mxu0 0
    %496 = vmatpush1.bf16.msra.mxu0 %v428
    %497 = vmatprep.subr.bf16.mxu0 0
    %498 = vmatpush1.bf16.msra.mxu0 %v429
    %499 = vmatprep.subr.bf16.mxu0 0
    %500 = vmatpush1.bf16.msra.mxu0 %v430
    %501 = vmatprep.subr.bf16.mxu0 0
    %502 = vmatpush1.bf16.msra.mxu0 %v431
    %503 = vmatprep.subr.bf16.mxu0 0
    %504 = vmatpush1.bf16.msra.mxu0 %v432
    %505 = vmatprep.subr.bf16.mxu0 0
    %506 = vmatpush1.bf16.msra.mxu0 %v433
    %507 = vmatprep.subr.bf16.mxu0 0
    %508 = vmatpush1.bf16.msra.mxu0 %v434
    %509 = vmatprep.subr.bf16.mxu0 0
    %510 = vmatpush1.bf16.msra.mxu0 %v435
    %511 = vmatprep.subr.bf16.mxu0 0
    %512 = vmatpush1.bf16.msra.mxu0 %v436
    %513 = vmatprep.subr.bf16.mxu0 0
    %514 = vmatpush1.bf16.msra.mxu0 %v437
    %515 = vmatprep.subr.bf16.mxu0 0
    %516 = vmatpush1.bf16.msra.mxu0 %v438
    %517 = vmatprep.subr.bf16.mxu0 0
    %518 = vmatpush1.bf16.msra.mxu0 %v439
    %519 = vmatprep.subr.bf16.mxu0 0
    %520 = vmatpush1.bf16.msra.mxu0 %v440
    %521 = vmatprep.mubr.bf16.mxu0 %v223
    %522 = vmatmul.mubr.bf16.gmra.mrb[0].mxu0 %v222
    %v523 = vpop.f32.mrb[0].mxu0
    %v524 = vadd.f32 %v295, %v523
    %v525 = vpop.f32.mrb[0].mxu0
    %v526 = vpop.f32.mrb[0].mxu0
    %v527 = vpop.f32.mrb[0].mxu0
    %528 = vdwg.mxu0
    %529 = vmatprep.subr.bf16.mxu0 0
    %530 = vmatpush1.bf16.msra.mxu0 %v441
    %531 = vmatprep.subr.bf16.mxu0 0
    %532 = vmatpush1.bf16.msra.mxu0 %v442
    %533 = vmatprep.subr.bf16.mxu0 0
    %534 = vmatpush1.bf16.msra.mxu0 %v443
    %535 = vmatprep.subr.bf16.mxu0 0
    %536 = vmatpush1.bf16.msra.mxu0 %v444
    %537 = vmatprep.subr.bf16.mxu0 0
    %538 = vmatpush1.bf16.msra.mxu0 %v445
    %539 = vmatprep.subr.bf16.mxu0 0
    %540 = vmatpush1.bf16.msra.mxu0 %v446
    %541 = vmatprep.subr.bf16.mxu0 0
    %542 = vmatpush1.bf16.msra.mxu0 %v447
    %543 = vmatprep.subr.bf16.mxu0 0
    %544 = vmatpush1.bf16.msra.mxu0 %v448
    %545 = vmatprep.subr.bf16.mxu0 0
    %546 = vmatpush1.bf16.msra.mxu0 %v449
    %547 = vmatprep.subr.bf16.mxu0 0
    %548 = vmatpush1.bf16.msra.mxu0 %v450
    %549 = vmatprep.subr.bf16.mxu0 0
    %550 = vmatpush1.bf16.msra.mxu0 %v451
    %551 = vmatprep.subr.bf16.mxu0 0
    %552 = vmatpush1.bf16.msra.mxu0 %v452
    %553 = vmatprep.subr.bf16.mxu0 0
    %554 = vmatpush1.bf16.msra.mxu0 %v453
    %555 = vmatprep.subr.bf16.mxu0 0
    %556 = vmatpush1.bf16.msra.mxu0 %v454
    %557 = vmatprep.subr.bf16.mxu0 0
    %558 = vmatpush1.bf16.msra.mxu0 %v455
    %559 = vmatprep.subr.bf16.mxu0 0
    %560 = vmatpush1.bf16.msra.mxu0 %v456
    %561 = vmatprep.mubr.bf16.mxu0 %v225
    %562 = vmatmul.mubr.bf16.gmra.mrb[0].mxu0 %v224
    %v563 = vpop.f32.mrb[0].mxu0
    %v564 = vadd.f32 %v524, %v563
    %v565 = vpop.f32.mrb[0].mxu0
    %v566 = vpop.f32.mrb[0].mxu0
    %v567 = vpop.f32.mrb[0].mxu0
    %568 = vdwg.mxu0
    %569 = vst [vmem:[#allocation8] sm:$0xff] %v564
    // Predicated region
    $region34: #{tpu_custom_call.1} parent=1 // pred_check
      _
    $region35: #{tpu_custom_call.1} parent=1 // pred_check_branch
      %571 = sbr.rel (0) target = $region37
    $region36: #{tpu_custom_call.1} parent=1 // pred_region
      %s573 = ssub.s32 128, 128
      %574 = vsyncadd [#allocation4], %s573
      %s576 = sshll.u32 [#allocation8], 4
      %s577 = int_to_ptr.vmem [resolvable:$true] %s576
      %579 = dma.vmem_to_hbm [thread:$0]  %s577, 128, %s5, [#allocation4]
    $region37: #{tpu_custom_call.1} parent=1 // pred_fallthru
      _
    // Predicated region
    $region38: #{tpu_custom_call.1} parent=1 // pred_check
      _
    $region39: #{tpu_custom_call.1} parent=1 // pred_check_branch
      %581 = sbr.rel (0) target = $region41
    $region40: #{tpu_custom_call.1} parent=1 // pred_region
      %582 = dma.done [#allocation4], 128
    $region41: #{tpu_custom_call.1} parent=1 // pred_fallthru
      _
    %583 = vsyncpa [#allocation3], 1
    %584 = vsyncpa [#allocation6], 1
    %585 = vsyncpa [#allocation4], 1

</llo_original>
